<compile_context>
chip_gen: v7x
topology: tpu7x:2x2x1
jax: 0.10.0
libtpu: 0.0.40
codegen_flags: <defaults>
</compile_context>

<pallas_src>
import functools
import random

import jax
import jax.numpy as jnp
import numpy as np
from jax import lax
from jax.experimental import pallas as pl
from jax.experimental.pallas import tpu as pltpu


@functools.lru_cache(maxsize=None)
def _pltpu_roll_sign():
    """Probe pltpu.roll's rotation convention once per process.

    Returns +1 if pltpu.roll(x, s) == jnp.roll(x, s) (out[p] = in[(p - s) % n]),
    -1 if it is the mirrored convention.
    """
    def k(x_ref, o_ref):
        o_ref[...] = pltpu.roll(x_ref[...], 1, axis=1)

    x = jnp.broadcast_to(jnp.arange(128, dtype=jnp.float32), (8, 128))
    y = pl.pallas_call(k, out_shape=jax.ShapeDtypeStruct((8, 128), jnp.float32))(x)
    v = float(jax.device_get(y)[0, 0])
    if v == 127.0:
        return 1
    if v == 1.0:
        return -1
    raise AssertionError(f"unexpected pltpu.roll semantics (probe value {v})")


def _shift_lanes(a, delta, roll_sign):
    """Circular shift on the last (lane) axis: out[..., p] = a[..., (p + delta) % n]."""
    n = a.shape[-1]
    amt = (-delta * roll_sign) % n
    if amt == 0:
        return a
    return pltpu.roll(a, amt, axis=a.ndim - 1)


def _fused_kernel(x_ref, w2_ref, w1_ref, o_ref, pb_ref, pc_ref,
                  *, shift, H, W, roll_sign):
    # x_ref : (nb, 2, 24, HW)   pair of channel groups to be summed
    # w2_ref: (24, 168)         [i_pad, k*24 + c] = W2[c, k, i]   (rows 21..23 zero)
    # w1_ref: (192, 72)         [j, kh*24 + i]    = W1[j, kh, i]  (cols i>=21 zero)
    # o_ref : (nb, 192, HW)
    # pb_ref: (168, nb*HW)      VMEM scratch: stage-B patch matrix
    # pc_ref: (72,  nb*HW)      VMEM scratch: stage-C patch matrix
    HW = H * W
    nb = x_ref.shape[0]
    L = nb * HW

    # ---- pair sum + fold the batch block onto the lane axis: (24, L) ----
    if nb == 1:
        s = x_ref[0, 0] + x_ref[0, 1]
    else:
        s = jnp.concatenate([x_ref[b, 0] + x_ref[b, 1] for b in range(nb)], axis=1)

    # Lane-coordinate masks (computed once per grid step, shared by all taps).
    lane = lax.broadcasted_iota(jnp.int32, (24, L), 1)
    w_idx = lane % W                          # w coordinate (row/batch safe)
    hw_idx = lane % HW if nb > 1 else lane    # position within one batch segment
    sm = shift % W                            # circular roll amount in [0, W)

    # ---- torch.roll(shift) along W (circular), on the folded lane axis ----
    # out[h, w] = s[h, (w - shift) mod W]
    if sm != 0:
        main = _shift_lanes(s, -sm, roll_sign)        # s[p - sm]
        wrap = _shift_lanes(s, W - sm, roll_sign)     # s[p - sm + W]
        s = jnp.where(w_idx >= sm, main, wrap)

    # ---- stage B: 7-tap zero-padded conv along W, 24 -> 21(+3 pad) channels ----
    for k in range(7):
        d = k - 3                                     # read offset along W
        if d == 0:
            tap = s
        else:
            shifted = _shift_lanes(s, d, roll_sign)   # s[p + d] (circular)
            mask = (w_idx < W - d) if d > 0 else (w_idx >= -d)
            tap = jnp.where(mask, shifted, 0.0)
        pb_ref[k * 24:(k + 1) * 24, :] = tap          # sublane-aligned slice store

    t5 = jnp.dot(w2_ref[...], pb_ref[...],
                 preferred_element_type=jnp.float32)  # (24, L)

    # ---- stage C: 3-tap zero-padded conv along H, 21(+pad) -> 192 channels ----
    for kh in range(3):
        dh = kh - 1                                   # read offset along H
        if dh == 0:
            row = t5
        else:
            shifted = _shift_lanes(t5, dh * W, roll_sign)
            # lane % HW so the +-W shift never leaks across batch segments
            mask = (hw_idx < HW - W) if dh > 0 else (hw_idx >= W)
            row = jnp.where(mask, shifted, 0.0)
        pc_ref[kh * 24:(kh + 1) * 24, :] = row

    out = jnp.dot(w1_ref[...], pc_ref[...],
                  preferred_element_type=jnp.float32)  # (192, L)

    # ---- per-element store: static, 128-aligned, unmasked lane slices ----
    for b in range(nb):
        o_ref[b] = out[:, b * HW:(b + 1) * HW].astype(o_ref.dtype)


def _num_tensorcores():
    """Best-effort TensorCore-per-chip count (2 on v4/v5p/v7x, else 1)."""
    try:
        kind = jax.devices()[0].device_kind.lower()
    except Exception:
        return 1
    if "v4" in kind or "v5p" in kind or "v7" in kind:
        return 2
    return 1


def _pick_nb(B, HW):
    """Batch elements folded onto the lane axis per grid step.

    Fewer, fatter steps amortize the ~0.35us per-step overhead; keep >= ntc
    grid steps only when the chip actually has multiple TensorCores, and stay
    inside a conservative VMEM budget (blocks + scratch + intermediates).
    """
    if HW % 128 != 0:
        return 1                          # keep per-element lane slices 128-aligned
    ntc = _num_tensorcores()
    per_b = 1008 * HW * 4                 # in/out blocks (x2 buf) + patches + out/t5/masks
    budget = 20 << 20
    best = 1
    for nb in (2, 4, 8, 16):
        if B % nb != 0:
            continue
        if nb * per_b > budget:
            continue
        if B // nb < ntc:
            continue                      # keep work for every TensorCore
        best = nb
    return best


def kernel_generated_2_forward(x, w1, w2, shift):
    """x: (B, 48, H, W) float32 -> (B, 192, H, W) float32."""
    B, c_in, H, W = x.shape
    assert c_in == 48, "module semantics require 2*24 input channels"
    HW = H * W

    # Lane-dense layout: flatten (H, W) onto the lane axis at the boundary.
    xr = x.reshape(B, 2, 24, HW)

    # Stage-B weight: (24,7,21) -> (21, 7*24) with flat index [i, k*24 + c],
    # zero-padded to 24 output rows (sublane alignment).
    w2r = jnp.transpose(w2, (2, 1, 0)).reshape(21, 7 * 24)
    w2r = jnp.pad(w2r, ((0, 3), (0, 0)))                               # (24, 168)
    # Stage-C weight: (192,3,21) -> (192, 3*24), zero-padding the i axis 21 -> 24.
    w1r = jnp.pad(w1, ((0, 0), (0, 0), (0, 3))).reshape(192, 3 * 24)   # (192, 72)

    nb = _pick_nb(B, HW)
    L = nb * HW
    roll_sign = _pltpu_roll_sign()

    cost = pl.CostEstimate(
        flops=2 * B * HW * (24 * 168 + 192 * 72),
        transcendentals=0,
        bytes_accessed=4 * (B * HW * (48 + 192) + 24 * 168 + 192 * 72),
    )

    out = pl.pallas_call(
        functools.partial(_fused_kernel, shift=int(shift), H=H, W=W,
                          roll_sign=roll_sign),
        out_shape=jax.ShapeDtypeStruct((B, 192, HW), jnp.float32),
        grid=(B // nb,),
        in_specs=[
            pl.BlockSpec((nb, 2, 24, HW), lambda b: (b, 0, 0, 0)),
            pl.BlockSpec((24, 7 * 24), lambda b: (0, 0)),
            pl.BlockSpec((192, 3 * 24), lambda b: (0, 0)),
        ],
        out_specs=pl.BlockSpec((nb, 192, HW), lambda b: (b, 0, 0)),
        scratch_shapes=[
            pltpu.VMEM((7 * 24, L), jnp.float32),   # stage-B patch matrix
            pltpu.VMEM((3 * 24, L), jnp.float32),   # stage-C patch matrix
        ],
        compiler_params=pltpu.CompilerParams(
            dimension_semantics=("parallel",),
            vmem_limit_bytes=32 * 1024 * 1024,
        ),
        cost_estimate=cost,
    )(xr, w2r, w1r)

    return out.reshape(B, 192, H, W)


def reference(x, w1, w2, shift):
    """Pure-JAX transcription of the PyTorch forward (for verification)."""
    B, _, H, W = x.shape
    t3 = x.reshape(B, 2, 24, H, W).sum(axis=1)
    t4 = jnp.roll(t3, shift, axis=3)
    t4p = jnp.pad(t4, ((0, 0), (0, 0), (0, 0), (3, 3)))
    patches = jnp.stack([t4p[..., k:k + W] for k in range(7)], axis=3)   # (B,24,H,7,W)
    t5 = jnp.einsum('ljnkm,jki->lnmi', patches, w2)                      # (B,H,W,21)
    t5p = jnp.pad(t5, ((0, 0), (1, 1), (0, 0), (0, 0)))
    t6 = jnp.stack([t5p[:, k:k + H] for k in range(3)], axis=1)          # (B,3,H,W,21)
    return jnp.einsum('lkmni,jki->ljmn', t6, w1)                         # (B,192,H,W)


if __name__ == "__main__":
    # Deterministic stand-in for the module's random shift_direction (+1 or -1).
    random.seed(0)
    shift_direction = int(random.random() > 0.5) * 2 - 1

    # Small shapes consistent with the module: 2*24 input channels, NCHW.
    B, H, W = 2, 16, 16
    key = jax.random.PRNGKey(0)
    kx, k1, k2 = jax.random.split(key, 3)
    x = jax.random.normal(kx, (B, 48, H, W), dtype=jnp.float32)
    w1 = jax.random.normal(k1, (192, 3, 21), dtype=jnp.float32)   # self.weights[0]
    w2 = jax.random.normal(k2, (24, 7, 21), dtype=jnp.float32)    # self.weights[1]

    # Check both roll directions (the module picks one at init time).
    for shift in (shift_direction, -shift_direction):
        y = jax.block_until_ready(kernel_generated_2_forward(x, w1, w2, shift))
        y_ref = reference(x, w1, w2, shift)
        assert y.shape == (B, 192, H, W)
        np.testing.assert_allclose(np.asarray(y), np.asarray(y_ref), rtol=1e-4, atol=1e-2)

    print("KERNEL_OK")
</pallas_src>

<mosaic_0001>
module attributes {stable_mosaic.version = 11 : i64} {
  func.func @k(%arg0: memref<8x128xf32, #tpu.memory_space<vmem>>, %arg1: memref<8x128xf32, #tpu.memory_space<vmem>>) attributes {dimension_semantics = [], scalar_prefetch = 0 : i64, scratch_operands = 0 : i64, tpu.core_type = #tpu.core_type<tc>} {
    %c0 = arith.constant 0 : index
    %c0_0 = arith.constant 0 : index
    %0 = vector.load %arg0[%c0, %c0_0] : memref<8x128xf32, #tpu.memory_space<vmem>>, vector<8x128xf32>
    %c1_i32 = arith.constant 1 : i32
    %1 = tpu.dynamic_rotate %0 by %c1_i32 dim 1 : vector<8x128xf32>, i32 -> vector<8x128xf32>
    %c0_1 = arith.constant 0 : index
    %c0_2 = arith.constant 0 : index
    %2 = vector.load %arg1[%c0_1, %c0_2] : memref<8x128xf32, #tpu.memory_space<vmem>>, vector<8x128xf32>
    tpu.vector_store %arg1[%c0_1, %c0_2], %1 {strides = array<i32>} : memref<8x128xf32, #tpu.memory_space<vmem>>, vector<8x128xf32>,
    return
  }
}

</mosaic_0001>

<llo_original>
// kernel: tpu_custom_call.1
$region0: #{tpu_custom_call.1}
  #allocation0 [shape = 'u32[]', space=smem, size = 0x4, offset = 0x4, fixed_abs, tag = 'smem constant byte address 0x4 - core index']
  #allocation1 [shape = 'u32[144,128]{1,0:T(1,128)}', space=vmem, size = 0x12000, scoped, tag = 'internal scratch']
  %s0 = inlined_call_operand.hbm [shape: f32[8,128], index: 0, kind: input, shape index: {}]
  %s1 = inlined_call_operand.hbm [shape: f32[8,128], index: 1, kind: output, shape index: {}]
  %s2 = sld [smem:[#allocation0]]
  $region18: #{tpu_custom_call.1} parent=0
    _
  %s4 = ssub.s32 1, %s2
  %s5 = scalar_select 0, %s4, %s2
  $region1: #{tpu_custom_call.1} parent=0
    #allocation2 [shape = 'u8[4096]{0}', space=vmem, size = 0x1000, scoped, tag = 'input window, operand 0, single buffered']
    #allocation3 [shape = 's32[1]{0}', space=sflag, size = 0x4, scoped, tag = 'scoped memory for tpu_custom_call.1']
    #allocation4 [shape = 's32[1]{0}', space=sflag, size = 0x4, scoped, tag = 'scoped memory for tpu_custom_call.1']
    #allocation5 [shape = 'u8[4096]{0}', space=vmem, size = 0x1000, scoped, tag = 'output window, operand 0, single buffered']
    %6 = vsyncpa [#allocation3], 0
    %7 = vsyncpa [#allocation4], 0
    // Predicated region
    $region2: #{tpu_custom_call.1} parent=1 // pred_check
      _
    $region3: #{tpu_custom_call.1} parent=1 // pred_check_branch
      %9 = sbr.rel (0) target = $region5
    $region4: #{tpu_custom_call.1} parent=1 // pred_region
      %s11 = ssub.s32 128, 128
      %12 = vsyncadd [#allocation3], %s11
      %s14 = sshll.u32 [#allocation2], 4
      %s15 = int_to_ptr.vmem [resolvable:$true] %s14
      %17 = dma.hbm_to_vmem [thread:$0]  %s0, 128, %s15, [#allocation3]
    $region5: #{tpu_custom_call.1} parent=1 // pred_fallthru
      _
    // Predicated region
    $region6: #{tpu_custom_call.1} parent=1 // pred_check
      _
    $region7: #{tpu_custom_call.1} parent=1 // pred_check_branch
      %19 = sbr.rel (0) target = $region9
    $region8: #{tpu_custom_call.1} parent=1 // pred_region
      %20 = dma.done [#allocation3], 128
    $region9: #{tpu_custom_call.1} parent=1 // pred_fallthru
      _
    %v21 = vld [vmem:[#allocation2] sm:$0xff]
    %22 = vrot.lane.b32.xlu0 %v21, 1
    %v23 = vpop.permute.xlu0 %22
    %24 = vst [vmem:[#allocation5] sm:$0xff] %v23
    // Predicated region
    $region10: #{tpu_custom_call.1} parent=1 // pred_check
      _
    $region11: #{tpu_custom_call.1} parent=1 // pred_check_branch
      %26 = sbr.rel (0) target = $region13
    $region12: #{tpu_custom_call.1} parent=1 // pred_region
      %s28 = ssub.s32 128, 128
      %29 = vsyncadd [#allocation4], %s28
      %s31 = sshll.u32 [#allocation5], 4
      %s32 = int_to_ptr.vmem [resolvable:$true] %s31
      %34 = dma.vmem_to_hbm [thread:$0]  %s32, 128, %s1, [#allocation4]
    $region13: #{tpu_custom_call.1} parent=1 // pred_fallthru
      _
    // Predicated region
    $region14: #{tpu_custom_call.1} parent=1 // pred_check
      _
    $region15: #{tpu_custom_call.1} parent=1 // pred_check_branch
      %36 = sbr.rel (0) target = $region17
    $region16: #{tpu_custom_call.1} parent=1 // pred_region
      %37 = dma.done [#allocation4], 128
    $region17: #{tpu_custom_call.1} parent=1 // pred_fallthru
      _
    %38 = vsyncpa [#allocation3], 1
    %39 = vsyncpa [#allocation4], 1

</llo_original>
